<compile_context>
chip_gen: v7x
topology: tpu7x:2x2x1
jax: 0.10.0
libtpu: 0.0.40
codegen_flags: <defaults>
</compile_context>

<pallas_src>
import jax
import jax.numpy as jnp
from jax.experimental import pallas as pl
from jax.experimental.pallas import tpu as pltpu

IN_DIM = 811
H1_DIM = 256
H2_DIM = 64
OUT_DIM = 1

H2_PAD = 128          # 64 -> 128 so h2 / w3 vregs stay lane-dense (weights only; tiny)
_MIN_SPLIT_B = 1024   # only force an even tile count when there is enough work


def _round_up(n, m):
    return (n + m - 1) // m * m


def _cdiv(a, b):
    return (a + b - 1) // b


def _mlp_kernel(x_ref, w1_ref, b1_ref, w2_ref, b2_ref, w3_ref, b3_ref, o_ref):
    # Layer 1: Linear + (Dropout == identity) + ReLU.
    # x arrives in its original dtype (f32 or bf16); cast to bf16 for the MXU,
    # accumulate in fp32.  K = 811 is ragged; Mosaic masks the tail lanes.
    x = x_ref[...].astype(jnp.bfloat16)                       # (tb, 811)
    h1 = jnp.dot(x, w1_ref[...], preferred_element_type=jnp.float32)
    h1 = jnp.maximum(h1 + b1_ref[...], 0.0)                   # (tb, 256) f32

    # Layer 2: Linear + (Dropout == identity) + ReLU.  H2 padded to 128 lanes
    # with exact zeros so padded lanes stay zero through ReLU.
    h2 = jnp.dot(h1.astype(jnp.bfloat16), w2_ref[...],
                 preferred_element_type=jnp.float32)
    h2 = jnp.maximum(h2 + b2_ref[...], 0.0)                   # (tb, 128) f32

    # Layer 3: (tb, 128) x (128, 1) would waste the MXU -> VPU mul + XLU lane
    # reduction.  Padded lanes of h2 / w3 are exact zeros, contributing nothing.
    w3_row = w3_ref[...].astype(jnp.float32)                  # (1, H2_PAD)
    logits = jnp.sum(h2 * w3_row, axis=-1, keepdims=True) + b3_ref[...]
    o_ref[...] = logits.astype(o_ref.dtype)


def lers_context_forward(x, params, *, tb_max=None):
    """x: (B, IN_DIM) float32 or bfloat16.  Returns logits (B, OUT_DIM) float32.

    For v5e prefer passing x already in bf16 (keeps the kernel MXU-bound);
    on v6e/v7x streaming f32 directly is fine (HBM-bound either way and the
    in-kernel cast avoids any host-side pre-pass).
    """
    w1, b1, w2, b2, w3, b3 = params
    B, K = x.shape
    assert K == IN_DIM, f"expected (B, {IN_DIM}), got {x.shape}"

    itemsize = jnp.dtype(x.dtype).itemsize
    if tb_max is None:
        # ~6.5 MiB per streamed x buffer (=> ~13 MiB double-buffered) on every gen.
        tb_max = 4096 if itemsize <= 2 else 2048

    # Derive the tile from B so batch-padding waste stays <8 rows per tile,
    # and keep the tile count even for large batches so both TensorCores on
    # dual-TC chips (v7x) get fed by the ("parallel",) grid axis.
    n_tiles = _cdiv(B, tb_max)
    if n_tiles % 2 == 1 and B >= _MIN_SPLIT_B:
        n_tiles += 1
    tb = _round_up(_cdiv(B, n_tiles), 8)
    # n_tiles * tb >= B; the partial last block is masked by Pallas (no host pad).

    # Weights / biases: tiny, loaded once per launch and VMEM-resident.
    # Host-side bf16 cast + lane padding here is negligible (<0.5 MiB total).
    w1_c = w1.astype(jnp.bfloat16)                                        # (811, 256)
    w2_p = jnp.pad(w2, ((0, 0), (0, H2_PAD - H2_DIM))).astype(jnp.bfloat16)
    b2_p = jnp.pad(b2, ((0, 0), (0, H2_PAD - H2_DIM)))
    w3_row = jnp.pad(w3, ((0, H2_PAD - H2_DIM), (0, 0))).astype(jnp.bfloat16)
    w3_row = w3_row.reshape(1, H2_PAD)

    resident = lambda shape: pl.BlockSpec(shape, lambda i: (0, 0))

    flops = 2 * n_tiles * tb * (IN_DIM * H1_DIM + H1_DIM * H2_PAD + H2_PAD * OUT_DIM)
    bytes_accessed = (
        n_tiles * tb * IN_DIM * itemsize                                   # streamed x (dominant)
        + B * OUT_DIM * 4                                                  # logits out
        + (IN_DIM * H1_DIM + H1_DIM * H2_PAD + H2_PAD * OUT_DIM) * 2       # bf16 weights
        + (H1_DIM + H2_PAD + OUT_DIM) * 4)                                 # f32 biases

    out = pl.pallas_call(
        _mlp_kernel,
        out_shape=jax.ShapeDtypeStruct((B, OUT_DIM), jnp.float32),
        grid_spec=pltpu.PrefetchScalarGridSpec(
            num_scalar_prefetch=0,
            grid=(n_tiles,),
            in_specs=[
                pl.BlockSpec((tb, IN_DIM), lambda i: (i, 0)),   # x: streamed, natural K
                resident((IN_DIM, H1_DIM)),                     # w1 (VMEM-resident)
                resident((1, H1_DIM)),                          # b1
                resident((H1_DIM, H2_PAD)),                     # w2
                resident((1, H2_PAD)),                          # b2
                resident((1, H2_PAD)),                          # w3 (row form)
                resident((1, OUT_DIM)),                         # b3
            ],
            out_specs=pl.BlockSpec((tb, OUT_DIM), lambda i: (i, 0)),
        ),
        compiler_params=pltpu.CompilerParams(
            dimension_semantics=("parallel",),
            vmem_limit_bytes=32 * 1024 * 1024,   # covers v5e's 16 MiB default too
        ),
        cost_estimate=pl.CostEstimate(
            flops=flops, transcendentals=0, bytes_accessed=bytes_accessed),
    )(x, w1_c, b1, w2_p, b2_p, w3_row, b3)

    return out


def init_params(key):
    """Deterministic init mimicking nn.Linear default (uniform +/- 1/sqrt(fan_in))."""
    def linear(key, fan_in, fan_out):
        kw, kb = jax.random.split(key)
        bound = 1.0 / jnp.sqrt(jnp.float32(fan_in))
        w = jax.random.uniform(kw, (fan_in, fan_out), jnp.float32, -bound, bound)
        b = jax.random.uniform(kb, (1, fan_out), jnp.float32, -bound, bound)
        return w, b

    k1, k2, k3 = jax.random.split(key, 3)
    w1, b1 = linear(k1, IN_DIM, H1_DIM)
    w2, b2 = linear(k2, H1_DIM, H2_DIM)
    w3, b3 = linear(k3, H2_DIM, OUT_DIM)
    return (w1, b1, w2, b2, w3, b3)


def reference_forward(x, params):
    w1, b1, w2, b2, w3, b3 = params
    h1 = jnp.maximum(x @ w1 + b1, 0.0)
    h2 = jnp.maximum(h1 @ w2 + b2, 0.0)
    return h2 @ w3 + b3


if __name__ == "__main__":
    key = jax.random.PRNGKey(0)
    kx, kp = jax.random.split(key)

    B = 8
    x = jax.random.normal(kx, (B, IN_DIM), dtype=jnp.float32)
    params = init_params(kp)

    ref = reference_forward(x, params)

    # f32-streamed path (x cast to bf16 in-kernel).
    out = jax.block_until_ready(lers_context_forward(x, params))
    assert out.shape == (B, OUT_DIM)
    # bf16 matmul inputs (fp32 accumulation) -> loosened tolerance vs fp32 reference.
    assert jnp.allclose(out, ref, atol=3e-2, rtol=3e-2), (
        f"max abs err {jnp.max(jnp.abs(out - ref))}")

    # bf16-upstream path (recommended on v5e) -- numerically identical cast point.
    out_bf16 = jax.block_until_ready(
        lers_context_forward(x.astype(jnp.bfloat16), params))
    assert jnp.allclose(out_bf16, ref, atol=3e-2, rtol=3e-2), (
        f"max abs err {jnp.max(jnp.abs(out_bf16 - ref))}")

    print("KERNEL_OK")
</pallas_src>

<mosaic_0001>
module attributes {stable_mosaic.version = 11 : i64} {
  func.func @_mlp_kernel(%arg0: i32, %arg1: memref<8x811xf32, #tpu.memory_space<vmem>>, %arg2: memref<811x256xbf16, #tpu.memory_space<vmem>>, %arg3: memref<1x256xf32, #tpu.memory_space<vmem>>, %arg4: memref<256x128xbf16, #tpu.memory_space<vmem>>, %arg5: memref<1x128xf32, #tpu.memory_space<vmem>>, %arg6: memref<1x128xbf16, #tpu.memory_space<vmem>>, %arg7: memref<1x1xf32, #tpu.memory_space<vmem>>, %arg8: memref<8x1xf32, #tpu.memory_space<vmem>>) attributes {dimension_semantics = [#tpu.dimension_semantics<parallel>], iteration_bounds = array<i64: 1>, scalar_prefetch = 0 : i64, scratch_operands = 0 : i64, tpu.core_type = #tpu.core_type<tc>, window_params = [{transform_indices = @transform_0, window_bounds = array<i64: 8, 811>}, {pipeline_mode = #tpu.pipeline_mode<synchronous>, transform_indices = @transform_1, window_bounds = array<i64: 811, 256>}, {pipeline_mode = #tpu.pipeline_mode<synchronous>, transform_indices = @transform_2, window_bounds = array<i64: 1, 256>}, {pipeline_mode = #tpu.pipeline_mode<synchronous>, transform_indices = @transform_3, window_bounds = array<i64: 256, 128>}, {pipeline_mode = #tpu.pipeline_mode<synchronous>, transform_indices = @transform_4, window_bounds = array<i64: 1, 128>}, {pipeline_mode = #tpu.pipeline_mode<synchronous>, transform_indices = @transform_5, window_bounds = array<i64: 1, 128>}, {pipeline_mode = #tpu.pipeline_mode<synchronous>, transform_indices = @transform_6, window_bounds = array<i64: 1, 1>}, {transform_indices = @transform_7, window_bounds = array<i64: 8, 1>}]} {
    %c0 = arith.constant 0 : index
    %c0_0 = arith.constant 0 : index
    %0 = vector.load %arg1[%c0, %c0_0] : memref<8x811xf32, #tpu.memory_space<vmem>>, vector<8x811xf32>
    %1 = arith.truncf %0 : vector<8x811xf32> to vector<8x811xbf16>
    %c0_1 = arith.constant 0 : index
    %c0_2 = arith.constant 0 : index
    %2 = vector.load %arg2[%c0_1, %c0_2] : memref<811x256xbf16, #tpu.memory_space<vmem>>, vector<811x256xbf16>
    %cst = arith.constant dense<0.000000e+00> : vector<8x256xf32>
    %3 = tpu.matmul %1, %2, %cst {dimension_numbers = #tpu.dot_dimension_numbers<[1], [0], [0], [1], [0, 0, 1, 1], [], []>} : vector<8x811xbf16>, vector<811x256xbf16>, vector<8x256xf32> -> vector<8x256xf32>
    %c0_3 = arith.constant 0 : index
    %c0_4 = arith.constant 0 : index
    %4 = vector.load %arg3[%c0_3, %c0_4] : memref<1x256xf32, #tpu.memory_space<vmem>>, vector<1x256xf32>
    %5 = vector.broadcast %4 : vector<1x256xf32> to vector<8x256xf32>
    %6 = arith.addf %3, %5 : vector<8x256xf32>
    %cst_5 = arith.constant 0.000000e+00 : f32
    %7 = vector.broadcast %cst_5 : f32 to vector<8x256xf32>
    %8 = arith.maximumf %6, %7 : vector<8x256xf32>
    %9 = arith.truncf %8 : vector<8x256xf32> to vector<8x256xbf16>
    %c0_6 = arith.constant 0 : index
    %c0_7 = arith.constant 0 : index
    %10 = vector.load %arg4[%c0_6, %c0_7] : memref<256x128xbf16, #tpu.memory_space<vmem>>, vector<256x128xbf16>
    %cst_8 = arith.constant dense<0.000000e+00> : vector<8x128xf32>
    %11 = tpu.matmul %9, %10, %cst_8 {dimension_numbers = #tpu.dot_dimension_numbers<[1], [0], [0], [1], [0, 0, 1, 1], [], []>} : vector<8x256xbf16>, vector<256x128xbf16>, vector<8x128xf32> -> vector<8x128xf32>
    %c0_9 = arith.constant 0 : index
    %c0_10 = arith.constant 0 : index
    %12 = vector.load %arg5[%c0_9, %c0_10] : memref<1x128xf32, #tpu.memory_space<vmem>>, vector<1x128xf32>
    %13 = vector.broadcast %12 : vector<1x128xf32> to vector<8x128xf32>
    %14 = arith.addf %11, %13 : vector<8x128xf32>
    %cst_11 = arith.constant 0.000000e+00 : f32
    %15 = vector.broadcast %cst_11 : f32 to vector<8x128xf32>
    %16 = arith.maximumf %14, %15 : vector<8x128xf32>
    %c0_12 = arith.constant 0 : index
    %c0_13 = arith.constant 0 : index
    %17 = vector.load %arg6[%c0_12, %c0_13] : memref<1x128xbf16, #tpu.memory_space<vmem>>, vector<1x128xbf16>
    %18 = arith.extf %17 : vector<1x128xbf16> to vector<1x128xf32>
    %19 = vector.broadcast %18 : vector<1x128xf32> to vector<8x128xf32>
    %20 = arith.mulf %16, %19 : vector<8x128xf32>
    %cst_14 = arith.constant dense<0.000000e+00> : vector<8xf32>
    %21 = vector.multi_reduction <add>, %20, %cst_14 [1] : vector<8x128xf32> to vector<8xf32>
    %22 = vector.shape_cast %21 : vector<8xf32> to vector<8x1xf32>
    %c0_15 = arith.constant 0 : index
    %c0_16 = arith.constant 0 : index
    %23 = vector.load %arg7[%c0_15, %c0_16] : memref<1x1xf32, #tpu.memory_space<vmem>>, vector<1x1xf32>
    %24 = vector.broadcast %23 : vector<1x1xf32> to vector<8x1xf32>
    %25 = arith.addf %22, %24 : vector<8x1xf32>
    %c0_17 = arith.constant 0 : index
    %c0_18 = arith.constant 0 : index
    %26 = vector.load %arg8[%c0_17, %c0_18] : memref<8x1xf32, #tpu.memory_space<vmem>>, vector<8x1xf32>
    tpu.vector_store %arg8[%c0_17, %c0_18], %25 {strides = array<i32>} : memref<8x1xf32, #tpu.memory_space<vmem>>, vector<8x1xf32>,
    return
  }
  func.func @transform_0(%arg0: i32) -> (i32, i32) {
    %c0_i32 = arith.constant 0 : i32
    %c0_i32_0 = arith.constant 0 : i32
    return %arg0, %c0_i32 : i32, i32
  }
  func.func @transform_1(%arg0: i32) -> (i32, i32) {
    %c0_i32 = arith.constant 0 : i32
    %c0_i32_0 = arith.constant 0 : i32
    %c0_i32_1 = arith.constant 0 : i32
    return %c0_i32, %c0_i32_0 : i32, i32
  }
  func.func @transform_2(%arg0: i32) -> (i32, i32) {
    %c0_i32 = arith.constant 0 : i32
    %c0_i32_0 = arith.constant 0 : i32
    %c0_i32_1 = arith.constant 0 : i32
    return %c0_i32, %c0_i32_0 : i32, i32
  }
  func.func @transform_3(%arg0: i32) -> (i32, i32) {
    %c0_i32 = arith.constant 0 : i32
    %c0_i32_0 = arith.constant 0 : i32
    %c0_i32_1 = arith.constant 0 : i32
    return %c0_i32, %c0_i32_0 : i32, i32
  }
  func.func @transform_4(%arg0: i32) -> (i32, i32) {
    %c0_i32 = arith.constant 0 : i32
    %c0_i32_0 = arith.constant 0 : i32
    %c0_i32_1 = arith.constant 0 : i32
    return %c0_i32, %c0_i32_0 : i32, i32
  }
  func.func @transform_5(%arg0: i32) -> (i32, i32) {
    %c0_i32 = arith.constant 0 : i32
    %c0_i32_0 = arith.constant 0 : i32
    %c0_i32_1 = arith.constant 0 : i32
    return %c0_i32, %c0_i32_0 : i32, i32
  }
  func.func @transform_6(%arg0: i32) -> (i32, i32) {
    %c0_i32 = arith.constant 0 : i32
    %c0_i32_0 = arith.constant 0 : i32
    %c0_i32_1 = arith.constant 0 : i32
    return %c0_i32, %c0_i32_0 : i32, i32
  }
  func.func @transform_7(%arg0: i32) -> (i32, i32) {
    %c0_i32 = arith.constant 0 : i32
    %c0_i32_0 = arith.constant 0 : i32
    return %arg0, %c0_i32 : i32, i32
  }
}

</mosaic_0001>

<llo_original>
// kernel: tpu_custom_call.1
$region0: #{tpu_custom_call.1}
  #allocation0 [shape = 'u32[]', space=smem, size = 0x4, offset = 0x4, fixed_abs, tag = 'smem constant byte address 0x4 - core index']
  #allocation1 [shape = 'u32[144,128]{1,0:T(1,128)}', space=vmem, size = 0x12000, scoped, tag = 'internal scratch']
  #allocation2 [shape = 'f32[1,1]{1,0:T(1,128)S(1)}', space=vmem, size = 0x200, scoped, tag = 'scoped memory for tpu_custom_call.1']
  %s0 = inlined_call_operand.hbm [shape: f32[8,811], index: 0, kind: input, shape index: {}]
  %s1 = inlined_call_operand.hbm [shape: bf16[811,256], index: 1, kind: input, shape index: {}]
  %s2 = inlined_call_operand.vmem [shape: f32[1,256], index: 2, kind: input, shape index: {}]
  %s3 = inlined_call_operand.hbm [shape: bf16[256,128], index: 3, kind: input, shape index: {}]
  %s4 = inlined_call_operand.vmem [shape: f32[1,128], index: 4, kind: input, shape index: {}]
  %s5 = inlined_call_operand.vmem [shape: bf16[1,128], index: 5, kind: input, shape index: {}]
  %s6 = inlined_call_operand.<no memory space> [shape: f32[1,1], index: 6, kind: input, shape index: {}]
  %s7 = inlined_call_operand.vmem [shape: f32[8,1], index: 7, kind: output, shape index: {}]
  %s8 = sld [smem:[#allocation0]]
  $region50: #{tpu_custom_call.1} parent=0
    _
  %s10 = ssub.s32 1, %s8
  %s11 = scalar_select 0, %s10, %s8
  %v12 = vstv %s6
  %13 = vst [vmem:[#allocation2] sm:$0x1] %v12
  $region1: #{tpu_custom_call.1} parent=0
    #allocation3 [shape = 'u8[28672]{0}', space=vmem, size = 0x7000, scoped, tag = 'input window, operand 0, single buffered']
    #allocation4 [shape = 's32[1]{0}', space=sflag, size = 0x4, scoped, tag = 'scoped memory for tpu_custom_call.1']
    #allocation5 [shape = 'u8[417792]{0}', space=vmem, size = 0x66000, scoped, tag = 'input window, operand 1, single buffered']
    #allocation6 [shape = 's32[1]{0}', space=sflag, size = 0x4, scoped, tag = 'scoped memory for tpu_custom_call.1']
    #allocation7 [shape = 'u8[65536]{0}', space=vmem, size = 0x10000, scoped, tag = 'input window, operand 3, single buffered']
    %14 = vsyncpa [#allocation4], 0
    %15 = vsyncpa [#allocation6], 0
    // Predicated region
    $region2: #{tpu_custom_call.1} parent=1 // pred_check
      _
    $region3: #{tpu_custom_call.1} parent=1 // pred_check_branch
      %17 = sbr.rel (0) target = $region5
    $region4: #{tpu_custom_call.1} parent=1 // pred_region
      %s19 = ssub.s32 896, 896
      %20 = vsyncadd [#allocation4], %s19
      %s22 = sshll.u32 [#allocation3], 4
      %s23 = int_to_ptr.vmem [resolvable:$true] %s22
      %25 = dma.hbm_to_vmem [thread:$0]  %s0, 896, %s23, [#allocation4]
    $region5: #{tpu_custom_call.1} parent=1 // pred_fallthru
      _
    // Predicated region
    $region6: #{tpu_custom_call.1} parent=1 // pred_check
      _
    $region7: #{tpu_custom_call.1} parent=1 // pred_check_branch
      %27 = sbr.rel (0) target = $region9
    $region8: #{tpu_custom_call.1} parent=1 // pred_region
      %s29 = ssub.s32 13056, 13056
      %30 = vsyncadd [#allocation6], %s29
      %s31 = sshll.u32 [#allocation5], 4
      %s32 = int_to_ptr.vmem [resolvable:$true] %s31
      %37 = dma.hbm_to_vmem [thread:$0]  %s1, 13056, %s32, [#allocation6], 128, 128, 8
    $region9: #{tpu_custom_call.1} parent=1 // pred_fallthru
      _
    // Predicated region
    $region10: #{tpu_custom_call.1} parent=1 // pred_check
      _
    $region11: #{tpu_custom_call.1} parent=1 // pred_check_branch
      %39 = sbr.rel (0) target = $region13
    $region12: #{tpu_custom_call.1} parent=1 // pred_region
      _
    $region13: #{tpu_custom_call.1} parent=1 // pred_fallthru
      _
    // Predicated region
    $region14: #{tpu_custom_call.1} parent=1 // pred_check
      _
    $region15: #{tpu_custom_call.1} parent=1 // pred_check_branch
      %41 = sbr.rel (0) target = $region17
    $region16: #{tpu_custom_call.1} parent=1 // pred_region
      %s43 = ssub.s32 2048, 2048
      %44 = vsyncadd [#allocation6], %s43
      %s45 = sshll.u32 [#allocation7], 4
      %s46 = int_to_ptr.vmem [resolvable:$true] %s45
      %51 = dma.hbm_to_vmem [thread:$0]  %s3, 2048, %s46, [#allocation6], 64, 64, 4
    $region17: #{tpu_custom_call.1} parent=1 // pred_fallthru
      _
    // Predicated region
    $region18: #{tpu_custom_call.1} parent=1 // pred_check
      _
    $region19: #{tpu_custom_call.1} parent=1 // pred_check_branch
      %53 = sbr.rel (0) target = $region21
    $region20: #{tpu_custom_call.1} parent=1 // pred_region
      _
    $region21: #{tpu_custom_call.1} parent=1 // pred_fallthru
      _
    // Predicated region
    $region22: #{tpu_custom_call.1} parent=1 // pred_check
      _
    $region23: #{tpu_custom_call.1} parent=1 // pred_check_branch
      %55 = sbr.rel (0) target = $region25
    $region24: #{tpu_custom_call.1} parent=1 // pred_region
      _
    $region25: #{tpu_custom_call.1} parent=1 // pred_fallthru
      _
    // Predicated region
    $region26: #{tpu_custom_call.1} parent=1 // pred_check
      _
    $region27: #{tpu_custom_call.1} parent=1 // pred_check_branch
      %57 = sbr.rel (0) target = $region29
    $region28: #{tpu_custom_call.1} parent=1 // pred_region
      _
    $region29: #{tpu_custom_call.1} parent=1 // pred_fallthru
      _
    // Predicated region
    $region30: #{tpu_custom_call.1} parent=1 // pred_check
      _
    $region31: #{tpu_custom_call.1} parent=1 // pred_check_branch
      %59 = sbr.rel (0) target = $region33
    $region32: #{tpu_custom_call.1} parent=1 // pred_region
      %60 = dma.done [#allocation4], 896
    $region33: #{tpu_custom_call.1} parent=1 // pred_fallthru
      _
    // Predicated region
    $region34: #{tpu_custom_call.1} parent=1 // pred_check
      _
    $region35: #{tpu_custom_call.1} parent=1 // pred_check_branch
      %62 = sbr.rel (0) target = $region37
    $region36: #{tpu_custom_call.1} parent=1 // pred_region
      %63 = dma.done [#allocation6], 13056
    $region37: #{tpu_custom_call.1} parent=1 // pred_fallthru
      _
    // Predicated region
    $region38: #{tpu_custom_call.1} parent=1 // pred_check
      _
    $region39: #{tpu_custom_call.1} parent=1 // pred_check_branch
      %65 = sbr.rel (0) target = $region41
    $region40: #{tpu_custom_call.1} parent=1 // pred_region
      %66 = dma.done [#allocation6], 2048
    $region41: #{tpu_custom_call.1} parent=1 // pred_fallthru
      _
    %v68 = vld [vmem:[#allocation3] sm:$0xff]
    %v69 = vld [vmem:[#allocation3 + $0x8] sm:$0xff]
    %v70 = vld [vmem:[#allocation3 + $0x10] sm:$0xff]
    %v71 = vld [vmem:[#allocation3 + $0x18] sm:$0xff]
    %v72 = vld [vmem:[#allocation3 + $0x20] sm:$0xff]
    %v73 = vld [vmem:[#allocation3 + $0x28] sm:$0xff]
    %v74 = vld [vmem:[#allocation3 + $0x30] sm:$0xff]
    %v75 = vpack.c.bf16 %v68, %v68
    %v76 = vpack.c.bf16 %v69, %v69
    %v77 = vpack.c.bf16 %v70, %v70
    %v78 = vpack.c.bf16 %v71, %v71
    %v79 = vpack.c.bf16 %v72, %v72
    %v80 = vpack.c.bf16 %v73, %v73
    %v81 = vpack.c.bf16 %v74, %v74
    %v82 = vld [vmem:[#allocation5] sm:$0xff]
    %v83 = vld [vmem:[#allocation5 + $0x8] sm:$0xff]
    %v84 = vld [vmem:[#allocation5 + $0x10] sm:$0xff]
    %v85 = vld [vmem:[#allocation5 + $0x18] sm:$0xff]
    %v86 = vld [vmem:[#allocation5 + $0x20] sm:$0xff]
    %v87 = vld [vmem:[#allocation5 + $0x28] sm:$0xff]
    %v88 = vld [vmem:[#allocation5 + $0x30] sm:$0xff]
    %v89 = vld [vmem:[#allocation5 + $0x38] sm:$0xff]
    %v90 = vld [vmem:[#allocation5 + $0x40] sm:$0xff]
    %v91 = vld [vmem:[#allocation5 + $0x48] sm:$0xff]
    %v92 = vld [vmem:[#allocation5 + $0x50] sm:$0xff]
    %v93 = vld [vmem:[#allocation5 + $0x58] sm:$0xff]
    %v94 = vld [vmem:[#allocation5 + $0x60] sm:$0xff]
    %v95 = vld [vmem:[#allocation5 + $0x68] sm:$0xff]
    %v96 = vld [vmem:[#allocation5 + $0x70] sm:$0xff]
    %v97 = vld [vmem:[#allocation5 + $0x78] sm:$0xff]
    %v98 = vld [vmem:[#allocation5 + $0x80] sm:$0xff]
    %v99 = vld [vmem:[#allocation5 + $0x88] sm:$0xff]
    %v100 = vld [vmem:[#allocation5 + $0x90] sm:$0xff]
    %v101 = vld [vmem:[#allocation5 + $0x98] sm:$0xff]
    %v102 = vld [vmem:[#allocation5 + $0xa0] sm:$0xff]
    %v103 = vld [vmem:[#allocation5 + $0xa8] sm:$0xff]
    %v104 = vld [vmem:[#allocation5 + $0xb0] sm:$0xff]
    %v105 = vld [vmem:[#allocation5 + $0xb8] sm:$0xff]
    %v106 = vld [vmem:[#allocation5 + $0xc0] sm:$0xff]
    %v107 = vld [vmem:[#allocation5 + $0xc8] sm:$0xff]
    %v108 = vld [vmem:[#allocation5 + $0xd0] sm:$0xff]
    %v109 = vld [vmem:[#allocation5 + $0xd8] sm:$0xff]
    %v110 = vld [vmem:[#allocation5 + $0xe0] sm:$0xff]
    %v111 = vld [vmem:[#allocation5 + $0xe8] sm:$0xff]
    %v112 = vld [vmem:[#allocation5 + $0xf0] sm:$0xff]
    %v113 = vld [vmem:[#allocation5 + $0xf8] sm:$0xff]
    %v114 = vld [vmem:[#allocation5 + $0x100] sm:$0xff]
    %v115 = vld [vmem:[#allocation5 + $0x108] sm:$0xff]
    %v116 = vld [vmem:[#allocation5 + $0x110] sm:$0xff]
    %v117 = vld [vmem:[#allocation5 + $0x118] sm:$0xff]
    %v118 = vld [vmem:[#allocation5 + $0x120] sm:$0xff]
    %v119 = vld [vmem:[#allocation5 + $0x128] sm:$0xff]
    %v120 = vld [vmem:[#allocation5 + $0x130] sm:$0xff]
    %v121 = vld [vmem:[#allocation5 + $0x138] sm:$0xff]
    %v122 = vld [vmem:[#allocation5 + $0x140] sm:$0xff]
    %v123 = vld [vmem:[#allocation5 + $0x148] sm:$0xff]
    %v124 = vld [vmem:[#allocation5 + $0x150] sm:$0xff]
    %v125 = vld [vmem:[#allocation5 + $0x158] sm:$0xff]
    %v126 = vld [vmem:[#allocation5 + $0x160] sm:$0xff]
    %v127 = vld [vmem:[#allocation5 + $0x168] sm:$0xff]
    %v128 = vld [vmem:[#allocation5 + $0x170] sm:$0xff]
    %v129 = vld [vmem:[#allocation5 + $0x178] sm:$0xff]
    %v130 = vld [vmem:[#allocation5 + $0x180] sm:$0xff]
    %v131 = vld [vmem:[#allocation5 + $0x188] sm:$0xff]
    %v132 = vld [vmem:[#allocation5 + $0x190] sm:$0xff]
    %v133 = vld [vmem:[#allocation5 + $0x198] sm:$0xff]
    %v134 = vld [vmem:[#allocation5 + $0x1a0] sm:$0xff]
    %v135 = vld [vmem:[#allocation5 + $0x1a8] sm:$0xff]
    %v136 = vld [vmem:[#allocation5 + $0x1b0] sm:$0xff]
    %v137 = vld [vmem:[#allocation5 + $0x1b8] sm:$0xff]
    %v138 = vld [vmem:[#allocation5 + $0x1c0] sm:$0xff]
    %v139 = vld [vmem:[#allocation5 + $0x1c8] sm:$0xff]
    %v140 = vld [vmem:[#allocation5 + $0x1d0] sm:$0xff]
    %v141 = vld [vmem:[#allocation5 + $0x1d8] sm:$0xff]
    %v142 = vld [vmem:[#allocation5 + $0x1e0] sm:$0xff]
    %v143 = vld [vmem:[#allocation5 + $0x1e8] sm:$0xff]
    %v144 = vld [vmem:[#allocation5 + $0x1f0] sm:$0xff]
    %v145 = vld [vmem:[#allocation5 + $0x1f8] sm:$0xff]
    %v146 = vld [vmem:[#allocation5 + $0x200] sm:$0xff]
    %v147 = vld [vmem:[#allocation5 + $0x208] sm:$0xff]
    %v148 = vld [vmem:[#allocation5 + $0x210] sm:$0xff]
    %v149 = vld [vmem:[#allocation5 + $0x218] sm:$0xff]
    %v150 = vld [vmem:[#allocation5 + $0x220] sm:$0xff]
    %v151 = vld [vmem:[#allocation5 + $0x228] sm:$0xff]
    %v152 = vld [vmem:[#allocation5 + $0x230] sm:$0xff]
    %v153 = vld [vmem:[#allocation5 + $0x238] sm:$0xff]
    %v154 = vld [vmem:[#allocation5 + $0x240] sm:$0xff]
    %v155 = vld [vmem:[#allocation5 + $0x248] sm:$0xff]
    %v156 = vld [vmem:[#allocation5 + $0x250] sm:$0xff]
    %v157 = vld [vmem:[#allocation5 + $0x258] sm:$0xff]
    %v158 = vld [vmem:[#allocation5 + $0x260] sm:$0xff]
    %v159 = vld [vmem:[#allocation5 + $0x268] sm:$0xff]
    %v160 = vld [vmem:[#allocation5 + $0x270] sm:$0xff]
    %v161 = vld [vmem:[#allocation5 + $0x278] sm:$0xff]
    %v162 = vld [vmem:[#allocation5 + $0x280] sm:$0xff]
    %v163 = vld [vmem:[#allocation5 + $0x288] sm:$0xff]
    %v164 = vld [vmem:[#allocation5 + $0x290] sm:$0xff]
    %v165 = vld [vmem:[#allocation5 + $0x298] sm:$0xff]
    %v166 = vld [vmem:[#allocation5 + $0x2a0] sm:$0xff]
    %v167 = vld [vmem:[#allocation5 + $0x2a8] sm:$0xff]
    %v168 = vld [vmem:[#allocation5 + $0x2b0] sm:$0xff]
    %v169 = vld [vmem:[#allocation5 + $0x2b8] sm:$0xff]
    %v170 = vld [vmem:[#allocation5 + $0x2c0] sm:$0xff]
    %v171 = vld [vmem:[#allocation5 + $0x2c8] sm:$0xff]
    %v172 = vld [vmem:[#allocation5 + $0x2d0] sm:$0xff]
    %v173 = vld [vmem:[#allocation5 + $0x2d8] sm:$0xff]
    %v174 = vld [vmem:[#allocation5 + $0x2e0] sm:$0xff]
    %v175 = vld [vmem:[#allocation5 + $0x2e8] sm:$0xff]
    %v176 = vld [vmem:[#allocation5 + $0x2f0] sm:$0xff]
    %v177 = vld [vmem:[#allocation5 + $0x2f8] sm:$0xff]
    %v178 = vld [vmem:[#allocation5 + $0x300] sm:$0xff]
    %v179 = vld [vmem:[#allocation5 + $0x308] sm:$0xff]
    %v180 = vld [vmem:[#allocation5 + $0x310] sm:$0xff]
    %v181 = vld [vmem:[#allocation5 + $0x318] sm:$0xff]
    %v182 = vld [vmem:[#allocation5 + $0x320] sm:$0xff]
    %v183 = vld [vmem:[#allocation5 + $0x328] sm:$0x33]
    %v184 = vld [vmem:[%s2] sm:$0x3]
    %v186 = vlaneseq
    %v187 = vshrl.u32 %v186, 7
    %v188 = vsub.s32 0, %v187
    %v189 = vrot.slane %v184, %v188
    %v190 = vlaneseq
    %v191 = vshrl.u32 %v190, 7
    %v192 = vsub.s32 1, %v191
    %v193 = vrot.slane %v184, %v192
    %v298 = vunpack.c.l.b16 %v82
    %v299 = vunpack.c.h.b16 %v82
    %v300 = vunpack.c.l.b16 %v83
    %v301 = vunpack.c.h.b16 %v83
    %v302 = vunpack.c.l.b16 %v84
    %v303 = vunpack.c.h.b16 %v84
    %v304 = vunpack.c.l.b16 %v85
    %v305 = vunpack.c.h.b16 %v85
    %v306 = vunpack.c.l.b16 %v86
    %v307 = vunpack.c.h.b16 %v86
    %v308 = vunpack.c.l.b16 %v87
    %v309 = vunpack.c.h.b16 %v87
    %v310 = vunpack.c.l.b16 %v88
    %v311 = vunpack.c.h.b16 %v88
    %v312 = vunpack.c.l.b16 %v89
    %v313 = vunpack.c.h.b16 %v89
    %v314 = vunpack.c.l.b16 %v90
    %v315 = vunpack.c.h.b16 %v90
    %v316 = vunpack.c.l.b16 %v91
    %v317 = vunpack.c.h.b16 %v91
    %v318 = vunpack.c.l.b16 %v92
    %v319 = vunpack.c.h.b16 %v92
    %v320 = vunpack.c.l.b16 %v93
    %v321 = vunpack.c.h.b16 %v93
    %v322 = vunpack.c.l.b16 %v94
    %v323 = vunpack.c.h.b16 %v94
    %v324 = vunpack.c.l.b16 %v95
    %v325 = vunpack.c.h.b16 %v95
    %v326 = vunpack.c.l.b16 %v96
    %v327 = vunpack.c.h.b16 %v96
    %v328 = vunpack.c.l.b16 %v97
    %v329 = vunpack.c.h.b16 %v97
    %v330 = vunpack.c.l.b16 %v98
    %v331 = vunpack.c.h.b16 %v98
    %v332 = vunpack.c.l.b16 %v99
    %v333 = vunpack.c.h.b16 %v99
    %v334 = vunpack.c.l.b16 %v100
    %v335 = vunpack.c.h.b16 %v100
    %v336 = vunpack.c.l.b16 %v101
    %v337 = vunpack.c.h.b16 %v101
    %v338 = vunpack.c.l.b16 %v102
    %v339 = vunpack.c.h.b16 %v102
    %v340 = vunpack.c.l.b16 %v103
    %v341 = vunpack.c.h.b16 %v103
    %v342 = vunpack.c.l.b16 %v104
    %v343 = vunpack.c.h.b16 %v104
    %v344 = vunpack.c.l.b16 %v105
    %v345 = vunpack.c.h.b16 %v105
    %v346 = vunpack.c.l.b16 %v106
    %v347 = vunpack.c.h.b16 %v106
    %v348 = vunpack.c.l.b16 %v107
    %v349 = vunpack.c.h.b16 %v107
    %v350 = vunpack.c.l.b16 %v108
    %v351 = vunpack.c.h.b16 %v108
    %v352 = vunpack.c.l.b16 %v109
    %v353 = vunpack.c.h.b16 %v109
    %v354 = vunpack.c.l.b16 %v110
    %v355 = vunpack.c.h.b16 %v110
    %v356 = vunpack.c.l.b16 %v111
    %v357 = vunpack.c.h.b16 %v111
    %v358 = vunpack.c.l.b16 %v112
    %v359 = vunpack.c.h.b16 %v112
    %v360 = vunpack.c.l.b16 %v113
    %v361 = vunpack.c.h.b16 %v113
    %v362 = vunpack.c.l.b16 %v114
    %v363 = vunpack.c.h.b16 %v114
    %v364 = vunpack.c.l.b16 %v115
    %v365 = vunpack.c.h.b16 %v115
    %v366 = vunpack.c.l.b16 %v116
    %v367 = vunpack.c.h.b16 %v116
    %v368 = vunpack.c.l.b16 %v117
    %v369 = vunpack.c.h.b16 %v117
    %v370 = vunpack.c.l.b16 %v118
    %v371 = vunpack.c.h.b16 %v118
    %v372 = vunpack.c.l.b16 %v119
    %v373 = vunpack.c.h.b16 %v119
    %v374 = vunpack.c.l.b16 %v120
    %v375 = vunpack.c.h.b16 %v120
    %v376 = vunpack.c.l.b16 %v121
    %v377 = vunpack.c.h.b16 %v121
    %v378 = vunpack.c.l.b16 %v122
    %v379 = vunpack.c.h.b16 %v122
    %v380 = vunpack.c.l.b16 %v123
    %v381 = vunpack.c.h.b16 %v123
    %v382 = vunpack.c.l.b16 %v124
    %v383 = vunpack.c.h.b16 %v124
    %v384 = vunpack.c.l.b16 %v125
    %v385 = vunpack.c.h.b16 %v125
    %v386 = vunpack.c.l.b16 %v126
    %v387 = vunpack.c.h.b16 %v126
    %v388 = vunpack.c.l.b16 %v127
    %v389 = vunpack.c.h.b16 %v127
    %v390 = vunpack.c.l.b16 %v128
    %v391 = vunpack.c.h.b16 %v128
    %v392 = vunpack.c.l.b16 %v129
    %v393 = vunpack.c.h.b16 %v129
    %v394 = vunpack.c.l.b16 %v130
    %v395 = vunpack.c.h.b16 %v130
    %v396 = vunpack.c.l.b16 %v131
    %v397 = vunpack.c.h.b16 %v131
    %v398 = vunpack.c.l.b16 %v132
    %v399 = vunpack.c.h.b16 %v132
    %v400 = vunpack.c.l.b16 %v133
    %v401 = vunpack.c.h.b16 %v133
    %v402 = vunpack.c.l.b16 %v134
    %v403 = vunpack.c.h.b16 %v134
    %v404 = vunpack.c.l.b16 %v135
    %v405 = vunpack.c.h.b16 %v135
    %v406 = vunpack.c.l.b16 %v136
    %v407 = vunpack.c.h.b16 %v136
    %v408 = vunpack.c.l.b16 %v137
    %v409 = vunpack.c.h.b16 %v137
    %v410 = vunpack.c.l.b16 %v138
    %v411 = vunpack.c.h.b16 %v138
    %v412 = vunpack.c.l.b16 %v139
    %v413 = vunpack.c.h.b16 %v139
    %v414 = vunpack.c.l.b16 %v140
    %v415 = vunpack.c.h.b16 %v140
    %v416 = vunpack.c.l.b16 %v141
    %v417 = vunpack.c.h.b16 %v141
    %v418 = vunpack.c.l.b16 %v142
    %v419 = vunpack.c.h.b16 %v142
    %v420 = vunpack.c.l.b16 %v143
    %v421 = vunpack.c.h.b16 %v143
    %v422 = vunpack.c.l.b16 %v144
    %v423 = vunpack.c.h.b16 %v144
    %v424 = vunpack.c.l.b16 %v145
    %v425 = vunpack.c.h.b16 %v145
    %v426 = vunpack.c.l.b16 %v146
    %v427 = vunpack.c.h.b16 %v146
    %v428 = vunpack.c.l.b16 %v147
    %v429 = vunpack.c.h.b16 %v147
    %v430 = vunpack.c.l.b16 %v148
    %v431 = vunpack.c.h.b16 %v148
    %v432 = vunpack.c.l.b16 %v149
    %v433 = vunpack.c.h.b16 %v149
    %v434 = vunpack.c.l.b16 %v150
    %v435 = vunpack.c.h.b16 %v150
    %v436 = vunpack.c.l.b16 %v151
    %v437 = vunpack.c.h.b16 %v151
    %v438 = vunpack.c.l.b16 %v152
    %v439 = vunpack.c.h.b16 %v152
    %v440 = vunpack.c.l.b16 %v153
    %v441 = vunpack.c.h.b16 %v153
    %v442 = vunpack.c.l.b16 %v154
    %v443 = vunpack.c.h.b16 %v154
    %v444 = vunpack.c.l.b16 %v155
    %v445 = vunpack.c.h.b16 %v155
    %v446 = vunpack.c.l.b16 %v156
    %v447 = vunpack.c.h.b16 %v156
    %v448 = vunpack.c.l.b16 %v157
    %v449 = vunpack.c.h.b16 %v157
    %v450 = vunpack.c.l.b16 %v158
    %v451 = vunpack.c.h.b16 %v158
    %v452 = vunpack.c.l.b16 %v159
    %v453 = vunpack.c.h.b16 %v159
    %v454 = vunpack.c.l.b16 %v160
    %v455 = vunpack.c.h.b16 %v160
    %v456 = vunpack.c.l.b16 %v161
    %v457 = vunpack.c.h.b16 %v161
    %v458 = vunpack.c.l.b16 %v162
    %v459 = vunpack.c.h.b16 %v162
    %v460 = vunpack.c.l.b16 %v163
    %v461 = vunpack.c.h.b16 %v163
    %v462 = vunpack.c.l.b16 %v164
    %v463 = vunpack.c.h.b16 %v164
    %v464 = vunpack.c.l.b16 %v165
    %v465 = vunpack.c.h.b16 %v165
    %v466 = vunpack.c.l.b16 %v166
    %v467 = vunpack.c.h.b16 %v166
    %v468 = vunpack.c.l.b16 %v167
    %v469 = vunpack.c.h.b16 %v167
    %v470 = vunpack.c.l.b16 %v168
    %v471 = vunpack.c.h.b16 %v168
    %v472 = vunpack.c.l.b16 %v169
    %v473 = vunpack.c.h.b16 %v169
    %v474 = vunpack.c.l.b16 %v170
    %v475 = vunpack.c.h.b16 %v170
    %v476 = vunpack.c.l.b16 %v171
    %v477 = vunpack.c.h.b16 %v171
    %v478 = vunpack.c.l.b16 %v172
    %v479 = vunpack.c.h.b16 %v172
    %v480 = vunpack.c.l.b16 %v173
    %v481 = vunpack.c.h.b16 %v173
    %v482 = vunpack.c.l.b16 %v174
    %v483 = vunpack.c.h.b16 %v174
    %v484 = vunpack.c.l.b16 %v175
    %v485 = vunpack.c.h.b16 %v175
    %v486 = vunpack.c.l.b16 %v176
    %v487 = vunpack.c.h.b16 %v176
    %v488 = vunpack.c.l.b16 %v177
    %v489 = vunpack.c.h.b16 %v177
    %v490 = vunpack.c.l.b16 %v178
    %v491 = vunpack.c.h.b16 %v178
    %v492 = vunpack.c.l.b16 %v179
    %v493 = vunpack.c.h.b16 %v179
    %v494 = vunpack.c.l.b16 %v180
    %v495 = vunpack.c.h.b16 %v180
    %v496 = vunpack.c.l.b16 %v181
    %v497 = vunpack.c.h.b16 %v181
    %v498 = vunpack.c.l.b16 %v182
    %v499 = vunpack.c.h.b16 %v182
    %v500 = vunpack.c.l.b16 %v183
    %v501 = vunpack.c.h.b16 %v183
    %v502 = vpack.c.b16 %v300, %v298
    %v503 = vpack.c.b16 %v301, %v299
    %v504 = vpack.c.b16 %v304, %v302
    %v505 = vpack.c.b16 %v305, %v303
    %v506 = vpack.c.b16 %v308, %v306
    %v507 = vpack.c.b16 %v309, %v307
    %v508 = vpack.c.b16 %v312, %v310
    %v509 = vpack.c.b16 %v313, %v311
    %v510 = vpack.c.b16 %v316, %v314
    %v511 = vpack.c.b16 %v317, %v315
    %v512 = vpack.c.b16 %v320, %v318
    %v513 = vpack.c.b16 %v321, %v319
    %v514 = vpack.c.b16 %v324, %v322
    %v515 = vpack.c.b16 %v325, %v323
    %v516 = vpack.c.b16 %v328, %v326
    %v517 = vpack.c.b16 %v329, %v327
    %v518 = vpack.c.b16 %v332, %v330
    %v519 = vpack.c.b16 %v333, %v331
    %v520 = vpack.c.b16 %v336, %v334
    %v521 = vpack.c.b16 %v337, %v335
    %v522 = vpack.c.b16 %v340, %v338
    %v523 = vpack.c.b16 %v341, %v339
    %v524 = vpack.c.b16 %v344, %v342
    %v525 = vpack.c.b16 %v345, %v343
    %v526 = vpack.c.b16 %v348, %v346
    %v527 = vpack.c.b16 %v349, %v347
    %v528 = vpack.c.b16 %v352, %v350
    %v529 = vpack.c.b16 %v353, %v351
    %v530 = vpack.c.b16 %v356, %v354
    %v531 = vpack.c.b16 %v357, %v355
    %v532 = vpack.c.b16 %v360, %v358
    %v533 = vpack.c.b16 %v361, %v359
    %v534 = vpack.c.b16 %v364, %v362
    %v535 = vpack.c.b16 %v365, %v363
    %v536 = vpack.c.b16 %v368, %v366
    %v537 = vpack.c.b16 %v369, %v367
    %v538 = vpack.c.b16 %v372, %v370
    %v539 = vpack.c.b16 %v373, %v371
    %v540 = vpack.c.b16 %v376, %v374
    %v541 = vpack.c.b16 %v377, %v375
    %v542 = vpack.c.b16 %v380, %v378
    %v543 = vpack.c.b16 %v381, %v379
    %v544 = vpack.c.b16 %v384, %v382
    %v545 = vpack.c.b16 %v385, %v383
    %v546 = vpack.c.b16 %v388, %v386
    %v547 = vpack.c.b16 %v389, %v387
    %v548 = vpack.c.b16 %v392, %v390
    %v549 = vpack.c.b16 %v393, %v391
    %v550 = vpack.c.b16 %v396, %v394
    %v551 = vpack.c.b16 %v397, %v395
    %v552 = vpack.c.b16 %v400, %v398
    %v553 = vpack.c.b16 %v401, %v399
    %v554 = vpack.c.b16 %v404, %v402
    %v555 = vpack.c.b16 %v405, %v403
    %v556 = vpack.c.b16 %v408, %v406
    %v557 = vpack.c.b16 %v409, %v407
    %v558 = vpack.c.b16 %v412, %v410
    %v559 = vpack.c.b16 %v413, %v411
    %v560 = vpack.c.b16 %v416, %v414
    %v561 = vpack.c.b16 %v417, %v415
    %v562 = vpack.c.b16 %v420, %v418
    %v563 = vpack.c.b16 %v421, %v419
    %v564 = vpack.c.b16 %v424, %v422
    %v565 = vpack.c.b16 %v425, %v423
    %v566 = vpack.c.b16 %v428, %v426
    %v567 = vpack.c.b16 %v429, %v427
    %v568 = vpack.c.b16 %v432, %v430
    %v569 = vpack.c.b16 %v433, %v431
    %v570 = vpack.c.b16 %v436, %v434
    %v571 = vpack.c.b16 %v437, %v435
    %v572 = vpack.c.b16 %v440, %v438
    %v573 = vpack.c.b16 %v441, %v439
    %v574 = vpack.c.b16 %v444, %v442
    %v575 = vpack.c.b16 %v445, %v443
    %v576 = vpack.c.b16 %v448, %v446
    %v577 = vpack.c.b16 %v449, %v447
    %v578 = vpack.c.b16 %v452, %v450
    %v579 = vpack.c.b16 %v453, %v451
    %v580 = vpack.c.b16 %v456, %v454
    %v581 = vpack.c.b16 %v457, %v455
    %v582 = vpack.c.b16 %v460, %v458
    %v583 = vpack.c.b16 %v461, %v459
    %v584 = vpack.c.b16 %v464, %v462
    %v585 = vpack.c.b16 %v465, %v463
    %v586 = vpack.c.b16 %v468, %v466
    %v587 = vpack.c.b16 %v469, %v467
    %v588 = vpack.c.b16 %v472, %v470
    %v589 = vpack.c.b16 %v473, %v471
    %v590 = vpack.c.b16 %v476, %v474
    %v591 = vpack.c.b16 %v477, %v475
    %v592 = vpack.c.b16 %v480, %v478
    %v593 = vpack.c.b16 %v481, %v479
    %v594 = vpack.c.b16 %v484, %v482
    %v595 = vpack.c.b16 %v485, %v483
    %v596 = vpack.c.b16 %v488, %v486
    %v597 = vpack.c.b16 %v489, %v487
    %v598 = vpack.c.b16 %v492, %v490
    %v599 = vpack.c.b16 %v493, %v491
    %v600 = vpack.c.b16 %v496, %v494
    %v601 = vpack.c.b16 %v497, %v495
    %v602 = vpack.c.b16 %v500, %v498
    %v603 = vpack.c.b16 %v501, %v499
    %vm704 = vcmask 351232
    %v706 = vsel %vm704, %v81, 0
    %vm708 = vcmask 1044480
    %vm709 = vcmask 1045504
    %v710 = vsel %vm708, 4294967295, 65535
    %v711 = vsel %vm709, %v710, 0
    %v713 = vand.u32 %v602, %v711
    %v716 = vand.u32 %v603, %v711
    %718 = vmatprep.subr.bf16.mxu0 %v503
    %719 = vmatpush1.bf16.msra.mxu0 %v502
    %720 = vmatprep.subr.bf16.mxu0 %v505
    %721 = vmatpush1.bf16.msra.mxu0 %v504
    %722 = vmatprep.subr.bf16.mxu0 %v507
    %723 = vmatpush1.bf16.msra.mxu0 %v506
    %724 = vmatprep.subr.bf16.mxu0 %v509
    %725 = vmatpush1.bf16.msra.mxu0 %v508
    %726 = vmatprep.subr.bf16.mxu0 %v511
    %727 = vmatpush1.bf16.msra.mxu0 %v510
    %728 = vmatprep.subr.bf16.mxu0 %v513
    %729 = vmatpush1.bf16.msra.mxu0 %v512
    %730 = vmatprep.subr.bf16.mxu0 %v515
    %731 = vmatpush1.bf16.msra.mxu0 %v514
    %732 = vmatprep.subr.bf16.mxu0 %v517
    %733 = vmatpush1.bf16.msra.mxu0 %v516
    %734 = vmatprep.subr.bf16.mxu0 %v519
    %735 = vmatpush1.bf16.msra.mxu0 %v518
    %736 = vmatprep.subr.bf16.mxu0 %v521
    %737 = vmatpush1.bf16.msra.mxu0 %v520
    %738 = vmatprep.subr.bf16.mxu0 %v523
    %739 = vmatpush1.bf16.msra.mxu0 %v522
    %740 = vmatprep.subr.bf16.mxu0 %v525
    %741 = vmatpush1.bf16.msra.mxu0 %v524
    %742 = vmatprep.subr.bf16.mxu0 %v527
    %743 = vmatpush1.bf16.msra.mxu0 %v526
    %744 = vmatprep.subr.bf16.mxu0 %v529
    %745 = vmatpush1.bf16.msra.mxu0 %v528
    %746 = vmatprep.subr.bf16.mxu0 %v531
    %747 = vmatpush1.bf16.msra.mxu0 %v530
    %748 = vmatprep.subr.bf16.mxu0 %v533
    %749 = vmatpush1.bf16.msra.mxu0 %v532
    %750 = vmatprep.mubr.bf16.mxu0 %v76
    %751 = vmatmul.mubr.bf16.gmra.mrb[0].mxu0 %v75
    %v752 = vpop.f32.mrb[0].mxu0
    %v753 = vadd.f32 %v189, %v752
    %v754 = vpop.f32.mrb[0].mxu0
    %v755 = vadd.f32 %v193, %v754
    %v756 = vpop.f32.mrb[0].mxu0
    %v757 = vpop.f32.mrb[0].mxu0
    %758 = vdwg.mxu0
    %759 = vmatprep.subr.bf16.mxu0 %v535
    %760 = vmatpush1.bf16.msra.mxu0 %v534
    %761 = vmatprep.subr.bf16.mxu0 %v537
    %762 = vmatpush1.bf16.msra.mxu0 %v536
    %763 = vmatprep.subr.bf16.mxu0 %v539
    %764 = vmatpush1.bf16.msra.mxu0 %v538
    %765 = vmatprep.subr.bf16.mxu0 %v541
    %766 = vmatpush1.bf16.msra.mxu0 %v540
    %767 = vmatprep.subr.bf16.mxu0 %v543
    %768 = vmatpush1.bf16.msra.mxu0 %v542
    %769 = vmatprep.subr.bf16.mxu0 %v545
    %770 = vmatpush1.bf16.msra.mxu0 %v544
    %771 = vmatprep.subr.bf16.mxu0 %v547
    %772 = vmatpush1.bf16.msra.mxu0 %v546
    %773 = vmatprep.subr.bf16.mxu0 %v549
    %774 = vmatpush1.bf16.msra.mxu0 %v548
    %775 = vmatprep.subr.bf16.mxu0 %v551
    %776 = vmatpush1.bf16.msra.mxu0 %v550
    %777 = vmatprep.subr.bf16.mxu0 %v553
    %778 = vmatpush1.bf16.msra.mxu0 %v552
    %779 = vmatprep.subr.bf16.mxu0 %v555
    %780 = vmatpush1.bf16.msra.mxu0 %v554
    %781 = vmatprep.subr.bf16.mxu0 %v557
    %782 = vmatpush1.bf16.msra.mxu0 %v556
    %783 = vmatprep.subr.bf16.mxu0 %v559
    %784 = vmatpush1.bf16.msra.mxu0 %v558
    %785 = vmatprep.subr.bf16.mxu0 %v561
    %786 = vmatpush1.bf16.msra.mxu0 %v560
    %787 = vmatprep.subr.bf16.mxu0 %v563
    %788 = vmatpush1.bf16.msra.mxu0 %v562
    %789 = vmatprep.subr.bf16.mxu0 %v565
    %790 = vmatpush1.bf16.msra.mxu0 %v564
    %791 = vmatprep.mubr.bf16.mxu0 %v78
    %792 = vmatmul.mubr.bf16.gmra.mrb[0].mxu0 %v77
    %v793 = vpop.f32.mrb[0].mxu0
    %v794 = vadd.f32 %v753, %v793
    %v795 = vpop.f32.mrb[0].mxu0
    %v796 = vadd.f32 %v755, %v795
    %v797 = vpop.f32.mrb[0].mxu0
    %v798 = vpop.f32.mrb[0].mxu0
    %799 = vdwg.mxu0
    %800 = vmatprep.subr.bf16.mxu0 %v567
    %801 = vmatpush1.bf16.msra.mxu0 %v566
    %802 = vmatprep.subr.bf16.mxu0 %v569
    %803 = vmatpush1.bf16.msra.mxu0 %v568
    %804 = vmatprep.subr.bf16.mxu0 %v571
    %805 = vmatpush1.bf16.msra.mxu0 %v570
    %806 = vmatprep.subr.bf16.mxu0 %v573
    %807 = vmatpush1.bf16.msra.mxu0 %v572
    %808 = vmatprep.subr.bf16.mxu0 %v575
    %809 = vmatpush1.bf16.msra.mxu0 %v574
    %810 = vmatprep.subr.bf16.mxu0 %v577
    %811 = vmatpush1.bf16.msra.mxu0 %v576
    %812 = vmatprep.subr.bf16.mxu0 %v579
    %813 = vmatpush1.bf16.msra.mxu0 %v578
    %814 = vmatprep.subr.bf16.mxu0 %v581
    %815 = vmatpush1.bf16.msra.mxu0 %v580
    %816 = vmatprep.subr.bf16.mxu0 %v583
    %817 = vmatpush1.bf16.msra.mxu0 %v582
    %818 = vmatprep.subr.bf16.mxu0 %v585
    %819 = vmatpush1.bf16.msra.mxu0 %v584
    %820 = vmatprep.subr.bf16.mxu0 %v587
    %821 = vmatpush1.bf16.msra.mxu0 %v586
    %822 = vmatprep.subr.bf16.mxu0 %v589
    %823 = vmatpush1.bf16.msra.mxu0 %v588
    %824 = vmatprep.subr.bf16.mxu0 %v591
    %825 = vmatpush1.bf16.msra.mxu0 %v590
    %826 = vmatprep.subr.bf16.mxu0 %v593
    %827 = vmatpush1.bf16.msra.mxu0 %v592
    %828 = vmatprep.subr.bf16.mxu0 %v595
    %829 = vmatpush1.bf16.msra.mxu0 %v594
    %830 = vmatprep.subr.bf16.mxu0 %v597
    %831 = vmatpush1.bf16.msra.mxu0 %v596
    %832 = vmatprep.mubr.bf16.mxu0 %v80
    %833 = vmatmul.mubr.bf16.gmra.mrb[0].mxu0 %v79
    %v834 = vpop.f32.mrb[0].mxu0
    %v835 = vadd.f32 %v794, %v834
    %v836 = vpop.f32.mrb[0].mxu0
    %v837 = vadd.f32 %v796, %v836
    %v838 = vpop.f32.mrb[0].mxu0
    %v839 = vpop.f32.mrb[0].mxu0
    %840 = vdwg.mxu0
    %841 = vmatprep.subr.bf16.mxu0 %v599
    %842 = vmatpush1.bf16.msra.mxu0 %v598
    %843 = vmatprep.subr.bf16.mxu0 %v601
    %844 = vmatpush1.bf16.msra.mxu0 %v600
    %845 = vmatprep.subr.bf16.mxu0 %v716
    %846 = vmatpush1.bf16.msra.mxu0 %v713
    %847 = vmatprep.subr.bf16.mxu0 0
    %848 = vmatpush1.bf16.msra.mxu0 0
    %849 = vmatprep.subr.bf16.mxu0 0
    %850 = vmatpush1.bf16.msra.mxu0 0
    %851 = vmatprep.subr.bf16.mxu0 0
    %852 = vmatpush1.bf16.msra.mxu0 0
    %853 = vmatprep.subr.bf16.mxu0 0
    %854 = vmatpush1.bf16.msra.mxu0 0
    %855 = vmatprep.subr.bf16.mxu0 0
    %856 = vmatpush1.bf16.msra.mxu0 0
    %857 = vmatprep.subr.bf16.mxu0 0
    %858 = vmatpush1.bf16.msra.mxu0 0
    %859 = vmatprep.subr.bf16.mxu0 0
    %860 = vmatpush1.bf16.msra.mxu0 0
    %861 = vmatprep.subr.bf16.mxu0 0
    %862 = vmatpush1.bf16.msra.mxu0 0
    %863 = vmatprep.subr.bf16.mxu0 0
    %864 = vmatpush1.bf16.msra.mxu0 0
    %865 = vmatprep.subr.bf16.mxu0 0
    %866 = vmatpush1.bf16.msra.mxu0 0
    %867 = vmatprep.subr.bf16.mxu0 0
    %868 = vmatpush1.bf16.msra.mxu0 0
    %869 = vmatprep.subr.bf16.mxu0 0
    %870 = vmatpush1.bf16.msra.mxu0 0
    %871 = vmatprep.subr.bf16.mxu0 0
    %872 = vmatpush1.bf16.msra.mxu0 0
    %873 = vmatprep.mubr.bf16.mxu0 0
    %874 = vmatmul.mubr.bf16.gmra.mrb[0].mxu0 %v706
    %v875 = vpop.f32.mrb[0].mxu0
    %v876 = vadd.f32 %v835, %v875
    %v877 = vpop.f32.mrb[0].mxu0
    %v878 = vadd.f32 %v837, %v877
    %v879 = vpop.f32.mrb[0].mxu0
    %v880 = vpop.f32.mrb[0].mxu0
    %881 = vdwg.mxu0
    %v882 = vmax.f32 %v876, 0.0
    %v883 = vmax.f32 %v878, 0.0
    %v884 = vpack.c.bf16 %v882, %v882
    %v885 = vpack.c.bf16 %v883, %v883
    %v886 = vld [vmem:[#allocation7] sm:$0xf]
    %v887 = vld [vmem:[#allocation7 + $0x4] sm:$0xf]
    %v888 = vld [vmem:[#allocation7 + $0x8] sm:$0xf]
    %v889 = vld [vmem:[#allocation7 + $0xc] sm:$0xf]
    %v890 = vld [vmem:[#allocation7 + $0x10] sm:$0xf]
    %v891 = vld [vmem:[#allocation7 + $0x14] sm:$0xf]
    %v892 = vld [vmem:[#allocation7 + $0x18] sm:$0xf]
    %v893 = vld [vmem:[#allocation7 + $0x1c] sm:$0xf]
    %v894 = vld [vmem:[#allocation7 + $0x20] sm:$0xf]
    %v895 = vld [vmem:[#allocation7 + $0x24] sm:$0xf]
    %v896 = vld [vmem:[#allocation7 + $0x28] sm:$0xf]
    %v897 = vld [vmem:[#allocation7 + $0x2c] sm:$0xf]
    %v898 = vld [vmem:[#allocation7 + $0x30] sm:$0xf]
    %v899 = vld [vmem:[#allocation7 + $0x34] sm:$0xf]
    %v900 = vld [vmem:[#allocation7 + $0x38] sm:$0xf]
    %v901 = vld [vmem:[#allocation7 + $0x3c] sm:$0xf]
    %v902 = vld [vmem:[#allocation7 + $0x40] sm:$0xf]
    %v903 = vld [vmem:[#allocation7 + $0x44] sm:$0xf]
    %v904 = vld [vmem:[#allocation7 + $0x48] sm:$0xf]
    %v905 = vld [vmem:[#allocation7 + $0x4c] sm:$0xf]
    %v906 = vld [vmem:[#allocation7 + $0x50] sm:$0xf]
    %v907 = vld [vmem:[#allocation7 + $0x54] sm:$0xf]
    %v908 = vld [vmem:[#allocation7 + $0x58] sm:$0xf]
    %v909 = vld [vmem:[#allocation7 + $0x5c] sm:$0xf]
    %v910 = vld [vmem:[#allocation7 + $0x60] sm:$0xf]
    %v911 = vld [vmem:[#allocation7 + $0x64] sm:$0xf]
    %v912 = vld [vmem:[#allocation7 + $0x68] sm:$0xf]
    %v913 = vld [vmem:[#allocation7 + $0x6c] sm:$0xf]
    %v914 = vld [vmem:[#allocation7 + $0x70] sm:$0xf]
    %v915 = vld [vmem:[#allocation7 + $0x74] sm:$0xf]
    %v916 = vld [vmem:[#allocation7 + $0x78] sm:$0xf]
    %v917 = vld [vmem:[#allocation7 + $0x7c] sm:$0xf]
    %v918 = vld [vmem:[%s4] sm:$0x1]
    %v920 = vlaneseq
    %v921 = vshrl.u32 %v920, 7
    %v922 = vsub.s32 0, %v921
    %v923 = vrot.slane %v918, %v922
    %v957 = vunpack.c.l.b16 %v886
    %v958 = vunpack.c.l.b16 %v887
    %v959 = vunpack.c.l.b16 %v888
    %v960 = vunpack.c.l.b16 %v889
    %v961 = vunpack.c.l.b16 %v890
    %v962 = vunpack.c.l.b16 %v891
    %v963 = vunpack.c.l.b16 %v892
    %v964 = vunpack.c.l.b16 %v893
    %v965 = vunpack.c.l.b16 %v894
    %v966 = vunpack.c.l.b16 %v895
    %v967 = vunpack.c.l.b16 %v896
    %v968 = vunpack.c.l.b16 %v897
    %v969 = vunpack.c.l.b16 %v898
    %v970 = vunpack.c.l.b16 %v899
    %v971 = vunpack.c.l.b16 %v900
    %v972 = vunpack.c.l.b16 %v901
    %v973 = vunpack.c.l.b16 %v902
    %v974 = vunpack.c.l.b16 %v903
    %v975 = vunpack.c.l.b16 %v904
    %v976 = vunpack.c.l.b16 %v905
    %v977 = vunpack.c.l.b16 %v906
    %v978 = vunpack.c.l.b16 %v907
    %v979 = vunpack.c.l.b16 %v908
    %v980 = vunpack.c.l.b16 %v909
    %v981 = vunpack.c.l.b16 %v910
    %v982 = vunpack.c.l.b16 %v911
    %v983 = vunpack.c.l.b16 %v912
    %v984 = vunpack.c.l.b16 %v913
    %v985 = vunpack.c.l.b16 %v914
    %v986 = vunpack.c.l.b16 %v915
    %v987 = vunpack.c.l.b16 %v916
    %v988 = vunpack.c.l.b16 %v917
    %v989 = vpack.c.b16 %v958, %v957
    %v990 = vpack.c.b16 %v960, %v959
    %v991 = vpack.c.b16 %v962, %v961
    %v992 = vpack.c.b16 %v964, %v963
    %v993 = vpack.c.b16 %v966, %v965
    %v994 = vpack.c.b16 %v968, %v967
    %v995 = vpack.c.b16 %v970, %v969
    %v996 = vpack.c.b16 %v972, %v971
    %v997 = vpack.c.b16 %v974, %v973
    %v998 = vpack.c.b16 %v976, %v975
    %v999 = vpack.c.b16 %v978, %v977
    %v1000 = vpack.c.b16 %v980, %v979
    %v1001 = vpack.c.b16 %v982, %v981
    %v1002 = vpack.c.b16 %v984, %v983
    %v1003 = vpack.c.b16 %v986, %v985
    %v1004 = vpack.c.b16 %v988, %v987
    %1021 = vmatprep.subr.bf16.mxu0 0
    %1022 = vmatpush1.bf16.msra.mxu0 %v989
    %1023 = vmatprep.subr.bf16.mxu0 0
    %1024 = vmatpush1.bf16.msra.mxu0 %v990
    %1025 = vmatprep.subr.bf16.mxu0 0
    %1026 = vmatpush1.bf16.msra.mxu0 %v991
    %1027 = vmatprep.subr.bf16.mxu0 0
    %1028 = vmatpush1.bf16.msra.mxu0 %v992
    %1029 = vmatprep.subr.bf16.mxu0 0
    %1030 = vmatpush1.bf16.msra.mxu0 %v993
    %1031 = vmatprep.subr.bf16.mxu0 0
    %1032 = vmatpush1.bf16.msra.mxu0 %v994
    %1033 = vmatprep.subr.bf16.mxu0 0
    %1034 = vmatpush1.bf16.msra.mxu0 %v995
    %1035 = vmatprep.subr.bf16.mxu0 0
    %1036 = vmatpush1.bf16.msra.mxu0 %v996
    %1037 = vmatprep.subr.bf16.mxu0 0
    %1038 = vmatpush1.bf16.msra.mxu0 %v997
    %1039 = vmatprep.subr.bf16.mxu0 0
    %1040 = vmatpush1.bf16.msra.mxu0 %v998
    %1041 = vmatprep.subr.bf16.mxu0 0
    %1042 = vmatpush1.bf16.msra.mxu0 %v999
    %1043 = vmatprep.subr.bf16.mxu0 0
    %1044 = vmatpush1.bf16.msra.mxu0 %v1000
    %1045 = vmatprep.subr.bf16.mxu0 0
    %1046 = vmatpush1.bf16.msra.mxu0 %v1001
    %1047 = vmatprep.subr.bf16.mxu0 0
    %1048 = vmatpush1.bf16.msra.mxu0 %v1002
    %1049 = vmatprep.subr.bf16.mxu0 0
    %1050 = vmatpush1.bf16.msra.mxu0 %v1003
    %1051 = vmatprep.subr.bf16.mxu0 0
    %1052 = vmatpush1.bf16.msra.mxu0 %v1004
    %1053 = vmatprep.mubr.bf16.mxu0 %v885
    %1054 = vmatmul.mubr.bf16.gmra.mrb[0].mxu0 %v884
    %v1055 = vpop.f32.mrb[0].mxu0
    %v1056 = vadd.f32 %v923, %v1055
    %v1057 = vpop.f32.mrb[0].mxu0
    %v1058 = vpop.f32.mrb[0].mxu0
    %v1059 = vpop.f32.mrb[0].mxu0
    %1060 = vdwg.mxu0
    %v1061 = vmax.f32 %v1056, 0.0
    %v1062 = vld [vmem:[%s5] sm:$0x1]
    %v1063 = vunpack.c.l.bf16 %v1062
    %v1064 = vlaneseq
    %v1065 = vshrl.u32 %v1064, 7
    %v1066 = vsub.s32 0, %v1065
    %v1067 = vrot.slane %v1063, %v1066
    %v1068 = vmul.f32 %v1061, %v1067
    %1069 = vadd.xlane.f32.xlu0 %v1068
    %v1070 = vpop.xlane.xlu0 %1069
    %v1071 = vld [vmem:[#allocation2] sm:$0x1]
    %v1073 = vlaneseq
    %v1074 = vshrl.u32 %v1073, 7
    %v1075 = vsub.s32 0, %v1074
    %v1076 = vrot.slane %v1071, %v1075
    %v1078 = vadd.f32 %v1070, %v1076
    %vm1079 = vcmask 7168
    %1080 = vst.msk [vmem:[%s7] sm:$0xff] %vm1079, %v1078
    // Predicated region
    $region42: #{tpu_custom_call.1} parent=1 // pred_check
      _
    $region43: #{tpu_custom_call.1} parent=1 // pred_check_branch
      %1082 = sbr.rel (0) target = $region45
    $region44: #{tpu_custom_call.1} parent=1 // pred_region
      _
    $region45: #{tpu_custom_call.1} parent=1 // pred_fallthru
      _
    // Predicated region
    $region46: #{tpu_custom_call.1} parent=1 // pred_check
      _
    $region47: #{tpu_custom_call.1} parent=1 // pred_check_branch
      %1084 = sbr.rel (0) target = $region49
    $region48: #{tpu_custom_call.1} parent=1 // pred_region
      _
    $region49: #{tpu_custom_call.1} parent=1 // pred_fallthru
      _
    %1085 = vsyncpa [#allocation4], 1
    %1086 = vsyncpa [#allocation6], 1

</llo_original>
